<compile_context>
chip_gen: v6e
topology: v6e:2x2x1
jax: 0.10.0
libtpu: 0.0.40
codegen_flags: <defaults>
</compile_context>

<pallas_src>
import functools

import jax
import jax.numpy as jnp
from jax.experimental import pallas as pl
from jax.experimental.pallas import tpu as pltpu


def _leaky_relu(x, negative_slope=0.2):
    return jnp.where(x > 0, x, negative_slope * x)


def _round_up(n, m):
    return ((n + m - 1) // m) * m


def _paramnet_kernel(dense, layer_depth, compute_dtype, *refs):
    # refs layout: x_ref, [w1, b1 (if dense)], [wh_0, bh_0, ...], wo, bo, out_ref
    out_ref = refs[-1]
    refs = refs[:-1]

    idx = 0
    x_ref = refs[idx]
    idx += 1
    if dense:
        w1_ref, b1_ref = refs[idx], refs[idx + 1]
        idx += 2
    hidden_refs = refs[idx: idx + 2 * layer_depth]
    idx += 2 * layer_depth
    wo_ref, bo_ref = refs[idx], refs[idx + 1]

    # Cast to the MXU compute dtype on the VPU (hidden under the DMA shadow);
    # x is streamed from HBM exactly once, in its original dtype.
    h = x_ref[...].astype(compute_dtype)

    if dense:
        # MXU matmul with f32 accumulation; bias (1, N) broadcasts over rows.
        h = jnp.dot(h, w1_ref[...], preferred_element_type=jnp.float32)
        h = _leaky_relu(h + b1_ref[...]).astype(compute_dtype)

    for l in range(layer_depth):
        w_ref = hidden_refs[2 * l]
        b_ref = hidden_refs[2 * l + 1]
        h = jnp.dot(h, w_ref[...], preferred_element_type=jnp.float32)
        h = _leaky_relu(h + b_ref[...]).astype(compute_dtype)

    out = jnp.dot(h, wo_ref[...], preferred_element_type=jnp.float32) + bo_ref[...]
    out_ref[...] = out.astype(out_ref.dtype)   # exact (TM, out_dim) store, no padding


class ParamNetPallas:
    """JAX/Pallas re-implementation of ParamNet (forward only)."""

    def __init__(self, n_primitives, in_channel, param_dim, dense=True,
                 layer_depth=0, hidden_size=128, compute_dtype=jnp.bfloat16,
                 out_dtype=jnp.float32, block_rows=256, key=None):
        self.n_primitives = n_primitives
        self.param_dim = param_dim
        self.dense = dense
        self.layer_depth = layer_depth
        self.compute_dtype = jnp.dtype(compute_dtype)
        self.out_dtype = jnp.dtype(out_dtype)
        self.block_rows = int(block_rows)

        if layer_depth > 0 and not dense and in_channel != hidden_size:
            # Mirrors the PyTorch module, which would fail the same way at runtime.
            raise ValueError("dense=False with layer_depth>0 requires "
                             "in_channel == hidden_size")

        if key is None:
            key = jax.random.PRNGKey(0)

        def linear_params(key, fan_in, fan_out):
            kw, kb = jax.random.split(key)
            bound = 1.0 / jnp.sqrt(float(fan_in))
            w = jax.random.uniform(kw, (fan_in, fan_out), jnp.float32, -bound, bound)
            b = jax.random.uniform(kb, (fan_out,), jnp.float32, -bound, bound)
            return w, b

        keys = jax.random.split(key, 2 + layer_depth)
        out_dim = n_primitives * param_dim
        self.out_dim = out_dim

        if layer_depth == 0:
            self.w1, self.b1 = linear_params(keys[0], in_channel, in_channel)
            self.hidden = []
            self.wo, self.bo = linear_params(keys[1], in_channel, out_dim)
        else:
            self.w1, self.b1 = linear_params(keys[0], in_channel, hidden_size)
            self.hidden = [linear_params(keys[2 + i], hidden_size, hidden_size)
                           for i in range(layer_depth)]
            self.wo, self.bo = linear_params(keys[1], hidden_size, out_dim)

        # ---- kernel-ready parameters (VMEM-resident across grid steps) ------
        cd = self.compute_dtype
        self._w1_k = self.w1.astype(cd)
        self._b1_k = self.b1.reshape(1, -1)                               # f32 (1, N)
        self._hidden_k = [(w.astype(cd), b.reshape(1, -1)) for (w, b) in self.hidden]
        self._wo_k = self.wo.astype(cd)                                   # no column pad
        self._bo_k = self.bo.reshape(1, -1)                               # f32 (1, out_dim)

        # (K, N) dims actually executed -> cost estimate.
        dims = []
        if dense:
            dims.append((in_channel, self.w1.shape[1]))
        for _ in range(layer_depth):
            dims.append((hidden_size, hidden_size))
        final_in = in_channel if layer_depth == 0 else hidden_size
        dims.append((final_in, out_dim))
        self._layer_dims = dims

        # Physical VMEM capacity (clamp for vmem_limit_bytes); safe fallback.
        try:
            self._vmem_cap = int(pltpu.get_tpu_info().vmem_capacity_bytes)
        except Exception:
            self._vmem_cap = 64 << 20   # <= physical on v5e/v6e/v7x

    # Batch tile: multiple of 8 sublanes, never exceeding the batch (only the
    # ragged last tile over-reads), prefer 256-row MXU alignment and >=2 grid
    # steps (keeps both v7x TensorCores fed via dimension_semantics=parallel).
    def _pick_tm(self, B):
        if B <= 8:
            return max(B, 1)
        if B > 256:
            cand = _round_up(pl.cdiv(B, 2), 256)
        else:
            cand = _round_up(pl.cdiv(B, 2), 8)
        tm = min(self.block_rows, cand, (B // 8) * 8)
        return max(8, (tm // 8) * 8)

    def __call__(self, x):
        B, in_dim = x.shape
        out_dim = self.out_dim

        TM = self._pick_tm(B)
        grid = pl.cdiv(B, TM)

        args = [x]                                   # x streamed in its own dtype
        in_specs = [pl.BlockSpec((TM, in_dim), lambda i: (i, 0))]

        def resident(arr):
            # Same block index every grid step => stays resident in VMEM (no re-DMA).
            args.append(arr)
            in_specs.append(pl.BlockSpec(arr.shape, lambda i: (0, 0)))

        if self.dense:
            resident(self._w1_k)
            resident(self._b1_k)
        for (w, b) in self._hidden_k:
            resident(w)
            resident(b)
        resident(self._wo_k)
        resident(self._bo_k)

        kernel = functools.partial(_paramnet_kernel, self.dense, self.layer_depth,
                                   self.compute_dtype)

        # Advisory cost estimate (true bytes: x once, weights once, out once).
        flops = 2 * B * sum(k * n for (k, n) in self._layer_dims)
        bytes_accessed = (int(x.size) * x.dtype.itemsize
                          + sum(int(a.size) * a.dtype.itemsize for a in args[1:])
                          + B * out_dim * self.out_dtype.itemsize)

        # VMEM footprint: double-buffered x/out tiles + (double-buffered) resident
        # weights + a few f32 intermediates; clamp to physical, never below 32 MiB.
        resident_bytes = sum(int(a.size) * a.dtype.itemsize for a in args[1:])
        tile_bytes = TM * in_dim * x.dtype.itemsize + TM * out_dim * self.out_dtype.itemsize
        max_width = max([n for (_, n) in self._layer_dims] + [in_dim])
        interm_bytes = 3 * TM * max_width * 4
        footprint = 2 * (resident_bytes + tile_bytes) + interm_bytes
        vmem_limit = int(min(self._vmem_cap, max(32 << 20, 2 * footprint)))

        out_flat = pl.pallas_call(
            kernel,
            grid=(grid,),
            out_shape=jax.ShapeDtypeStruct((B, out_dim), self.out_dtype),
            in_specs=in_specs,
            out_specs=pl.BlockSpec((TM, out_dim), lambda i: (i, 0)),
            compiler_params=pltpu.CompilerParams(
                dimension_semantics=("parallel",),
                vmem_limit_bytes=vmem_limit),
            cost_estimate=pl.CostEstimate(
                flops=flops, transcendentals=0, bytes_accessed=bytes_accessed),
        )(*args)

        # Contiguous, unpadded -> the .view(B, n_primitives, param_dim) is free.
        return out_flat.reshape(B, self.n_primitives, self.param_dim)


def _reference_forward(net: ParamNetPallas, x):
    """Pure-JAX reference replicating the kernel's numeric path."""
    cd = net.compute_dtype
    h = x.astype(cd)
    if net.dense:
        h = _leaky_relu(jnp.dot(h, net.w1.astype(cd),
                                preferred_element_type=jnp.float32) + net.b1)
        h = h.astype(cd)
    for (w, b) in net.hidden:
        h = _leaky_relu(jnp.dot(h, w.astype(cd),
                                preferred_element_type=jnp.float32) + b)
        h = h.astype(cd)
    out = jnp.dot(h, net.wo.astype(cd),
                  preferred_element_type=jnp.float32) + net.bo
    return out.astype(net.out_dtype).reshape(x.shape[0], net.n_primitives, net.param_dim)


if __name__ == "__main__":
    key = jax.random.PRNGKey(0)
    k_param, k_x, k_x2 = jax.random.split(key, 3)

    # Small config consistent with the module:
    #   in_channel=32, hidden_size=32, layer_depth=1,
    #   n_primitives=4, param_dim=8  -> output (B, 4, 8)
    B, in_channel = 8, 32
    n_primitives, param_dim = 4, 8
    x = jax.random.normal(k_x, (B, in_channel), jnp.float32)

    # 1) f32 compute path — tight correctness check.
    net32 = ParamNetPallas(n_primitives=n_primitives, in_channel=in_channel,
                           param_dim=param_dim, dense=True, layer_depth=1,
                           hidden_size=32, compute_dtype=jnp.float32,
                           key=k_param)
    out32 = jax.block_until_ready(net32(x))
    ref32 = _reference_forward(net32, x)
    assert out32.shape == (B, n_primitives, param_dim), out32.shape
    assert jnp.allclose(out32, ref32, atol=1e-4, rtol=1e-4), \
        float(jnp.max(jnp.abs(out32 - ref32)))

    # 2) bf16 weights/activations (MXU fast path), f32 accumulation, f32 output.
    net16 = ParamNetPallas(n_primitives=n_primitives, in_channel=in_channel,
                           param_dim=param_dim, dense=True, layer_depth=1,
                           hidden_size=32, compute_dtype=jnp.bfloat16,
                           key=k_param)
    out16 = jax.block_until_ready(net16(x))
    ref16 = _reference_forward(net16, x)
    assert out16.shape == (B, n_primitives, param_dim), out16.shape
    assert jnp.allclose(out16, ref16, atol=2e-2, rtol=2e-2), \
        float(jnp.max(jnp.abs(out16 - ref16)))

    # 3) Multi-step grid with a ragged last tile (no batch padding, B=300, TM=128).
    B2 = 300
    x2 = jax.random.normal(k_x2, (B2, in_channel), jnp.float32)
    net_grid = ParamNetPallas(n_primitives=n_primitives, in_channel=in_channel,
                              param_dim=param_dim, dense=True, layer_depth=1,
                              hidden_size=32, compute_dtype=jnp.bfloat16,
                              block_rows=128, key=k_param)
    out_g = jax.block_until_ready(net_grid(x2))
    ref_g = _reference_forward(net_grid, x2)
    assert out_g.shape == (B2, n_primitives, param_dim), out_g.shape
    assert jnp.allclose(out_g, ref_g, atol=2e-2, rtol=2e-2), \
        float(jnp.max(jnp.abs(out_g - ref_g)))

    print("KERNEL_OK")
</pallas_src>

<mosaic_0001>
module attributes {stable_mosaic.version = 11 : i64} {
  func.func @_paramnet_kernel(%arg0: i32, %arg1: memref<8x32xf32, #tpu.memory_space<vmem>>, %arg2: memref<32x32xf32, #tpu.memory_space<vmem>>, %arg3: memref<1x32xf32, #tpu.memory_space<vmem>>, %arg4: memref<32x32xf32, #tpu.memory_space<vmem>>, %arg5: memref<1x32xf32, #tpu.memory_space<vmem>>, %arg6: memref<32x32xf32, #tpu.memory_space<vmem>>, %arg7: memref<1x32xf32, #tpu.memory_space<vmem>>, %arg8: memref<8x32xf32, #tpu.memory_space<vmem>>) attributes {dimension_semantics = [#tpu.dimension_semantics<parallel>], iteration_bounds = array<i64: 1>, scalar_prefetch = 0 : i64, scratch_operands = 0 : i64, tpu.core_type = #tpu.core_type<tc>, window_params = [{transform_indices = @transform_0, window_bounds = array<i64: 8, 32>}, {pipeline_mode = #tpu.pipeline_mode<synchronous>, transform_indices = @transform_1, window_bounds = array<i64: 32, 32>}, {pipeline_mode = #tpu.pipeline_mode<synchronous>, transform_indices = @transform_2, window_bounds = array<i64: 1, 32>}, {pipeline_mode = #tpu.pipeline_mode<synchronous>, transform_indices = @transform_3, window_bounds = array<i64: 32, 32>}, {pipeline_mode = #tpu.pipeline_mode<synchronous>, transform_indices = @transform_4, window_bounds = array<i64: 1, 32>}, {pipeline_mode = #tpu.pipeline_mode<synchronous>, transform_indices = @transform_5, window_bounds = array<i64: 32, 32>}, {pipeline_mode = #tpu.pipeline_mode<synchronous>, transform_indices = @transform_6, window_bounds = array<i64: 1, 32>}, {transform_indices = @transform_7, window_bounds = array<i64: 8, 32>}]} {
    %c0 = arith.constant 0 : index
    %c0_0 = arith.constant 0 : index
    %0 = vector.load %arg1[%c0, %c0_0] : memref<8x32xf32, #tpu.memory_space<vmem>>, vector<8x32xf32>
    %c0_1 = arith.constant 0 : index
    %c0_2 = arith.constant 0 : index
    %1 = vector.load %arg2[%c0_1, %c0_2] : memref<32x32xf32, #tpu.memory_space<vmem>>, vector<32x32xf32>
    %cst = arith.constant dense<0.000000e+00> : vector<8x32xf32>
    %2 = tpu.matmul %0, %1, %cst {dimension_numbers = #tpu.dot_dimension_numbers<[1], [0], [0], [1], [0, 0, 1, 1], [], []>} : vector<8x32xf32>, vector<32x32xf32>, vector<8x32xf32> -> vector<8x32xf32>
    %c0_3 = arith.constant 0 : index
    %c0_4 = arith.constant 0 : index
    %3 = vector.load %arg3[%c0_3, %c0_4] : memref<1x32xf32, #tpu.memory_space<vmem>>, vector<1x32xf32>
    %4 = vector.broadcast %3 : vector<1x32xf32> to vector<8x32xf32>
    %5 = arith.addf %2, %4 : vector<8x32xf32>
    %cst_5 = arith.constant 0.000000e+00 : f32
    %6 = vector.broadcast %cst_5 : f32 to vector<8x32xf32>
    %7 = arith.cmpf ogt, %5, %6 : vector<8x32xf32>
    %cst_6 = arith.constant 2.000000e-01 : f32
    %8 = vector.broadcast %cst_6 : f32 to vector<8x32xf32>
    %9 = arith.mulf %8, %5 : vector<8x32xf32>
    %10 = arith.select %7, %5, %9 : vector<8x32xi1>, vector<8x32xf32>
    %c0_7 = arith.constant 0 : index
    %c0_8 = arith.constant 0 : index
    %11 = vector.load %arg4[%c0_7, %c0_8] : memref<32x32xf32, #tpu.memory_space<vmem>>, vector<32x32xf32>
    %cst_9 = arith.constant dense<0.000000e+00> : vector<8x32xf32>
    %12 = tpu.matmul %10, %11, %cst_9 {dimension_numbers = #tpu.dot_dimension_numbers<[1], [0], [0], [1], [0, 0, 1, 1], [], []>} : vector<8x32xf32>, vector<32x32xf32>, vector<8x32xf32> -> vector<8x32xf32>
    %c0_10 = arith.constant 0 : index
    %c0_11 = arith.constant 0 : index
    %13 = vector.load %arg5[%c0_10, %c0_11] : memref<1x32xf32, #tpu.memory_space<vmem>>, vector<1x32xf32>
    %14 = vector.broadcast %13 : vector<1x32xf32> to vector<8x32xf32>
    %15 = arith.addf %12, %14 : vector<8x32xf32>
    %cst_12 = arith.constant 0.000000e+00 : f32
    %16 = vector.broadcast %cst_12 : f32 to vector<8x32xf32>
    %17 = arith.cmpf ogt, %15, %16 : vector<8x32xf32>
    %cst_13 = arith.constant 2.000000e-01 : f32
    %18 = vector.broadcast %cst_13 : f32 to vector<8x32xf32>
    %19 = arith.mulf %18, %15 : vector<8x32xf32>
    %20 = arith.select %17, %15, %19 : vector<8x32xi1>, vector<8x32xf32>
    %c0_14 = arith.constant 0 : index
    %c0_15 = arith.constant 0 : index
    %21 = vector.load %arg6[%c0_14, %c0_15] : memref<32x32xf32, #tpu.memory_space<vmem>>, vector<32x32xf32>
    %cst_16 = arith.constant dense<0.000000e+00> : vector<8x32xf32>
    %22 = tpu.matmul %20, %21, %cst_16 {dimension_numbers = #tpu.dot_dimension_numbers<[1], [0], [0], [1], [0, 0, 1, 1], [], []>} : vector<8x32xf32>, vector<32x32xf32>, vector<8x32xf32> -> vector<8x32xf32>
    %c0_17 = arith.constant 0 : index
    %c0_18 = arith.constant 0 : index
    %23 = vector.load %arg7[%c0_17, %c0_18] : memref<1x32xf32, #tpu.memory_space<vmem>>, vector<1x32xf32>
    %24 = vector.broadcast %23 : vector<1x32xf32> to vector<8x32xf32>
    %25 = arith.addf %22, %24 : vector<8x32xf32>
    %c0_19 = arith.constant 0 : index
    %c0_20 = arith.constant 0 : index
    %26 = vector.load %arg8[%c0_19, %c0_20] : memref<8x32xf32, #tpu.memory_space<vmem>>, vector<8x32xf32>
    tpu.vector_store %arg8[%c0_19, %c0_20], %25 {strides = array<i32>} : memref<8x32xf32, #tpu.memory_space<vmem>>, vector<8x32xf32>,
    return
  }
  func.func @transform_0(%arg0: i32) -> (i32, i32) {
    %c0_i32 = arith.constant 0 : i32
    %c0_i32_0 = arith.constant 0 : i32
    return %arg0, %c0_i32 : i32, i32
  }
  func.func @transform_1(%arg0: i32) -> (i32, i32) {
    %c0_i32 = arith.constant 0 : i32
    %c0_i32_0 = arith.constant 0 : i32
    %c0_i32_1 = arith.constant 0 : i32
    return %c0_i32, %c0_i32_0 : i32, i32
  }
  func.func @transform_2(%arg0: i32) -> (i32, i32) {
    %c0_i32 = arith.constant 0 : i32
    %c0_i32_0 = arith.constant 0 : i32
    %c0_i32_1 = arith.constant 0 : i32
    return %c0_i32, %c0_i32_0 : i32, i32
  }
  func.func @transform_3(%arg0: i32) -> (i32, i32) {
    %c0_i32 = arith.constant 0 : i32
    %c0_i32_0 = arith.constant 0 : i32
    %c0_i32_1 = arith.constant 0 : i32
    return %c0_i32, %c0_i32_0 : i32, i32
  }
  func.func @transform_4(%arg0: i32) -> (i32, i32) {
    %c0_i32 = arith.constant 0 : i32
    %c0_i32_0 = arith.constant 0 : i32
    %c0_i32_1 = arith.constant 0 : i32
    return %c0_i32, %c0_i32_0 : i32, i32
  }
  func.func @transform_5(%arg0: i32) -> (i32, i32) {
    %c0_i32 = arith.constant 0 : i32
    %c0_i32_0 = arith.constant 0 : i32
    %c0_i32_1 = arith.constant 0 : i32
    return %c0_i32, %c0_i32_0 : i32, i32
  }
  func.func @transform_6(%arg0: i32) -> (i32, i32) {
    %c0_i32 = arith.constant 0 : i32
    %c0_i32_0 = arith.constant 0 : i32
    %c0_i32_1 = arith.constant 0 : i32
    return %c0_i32, %c0_i32_0 : i32, i32
  }
  func.func @transform_7(%arg0: i32) -> (i32, i32) {
    %c0_i32 = arith.constant 0 : i32
    %c0_i32_0 = arith.constant 0 : i32
    return %arg0, %c0_i32 : i32, i32
  }
}

</mosaic_0001>

<llo_original>
// kernel: tpu_custom_call.1
$region0: #{tpu_custom_call.1}
  #allocation0 [shape = 'u32[]', space=smem, size = 0x4, offset = 0x4, fixed_abs, tag = 'smem constant byte address 0x4 - core index']
  #allocation1 [shape = 'u32[144,128]{1,0:T(1,128)}', space=vmem, size = 0x12000, scoped, tag = 'internal scratch']
  %s0 = inlined_call_operand.hbm [shape: f32[8,32], index: 0, kind: input, shape index: {}]
  %s1 = inlined_call_operand.hbm [shape: f32[32,32], index: 1, kind: input, shape index: {}]
  %s2 = inlined_call_operand.vmem [shape: f32[1,32], index: 2, kind: input, shape index: {}]
  %s3 = inlined_call_operand.hbm [shape: f32[32,32], index: 3, kind: input, shape index: {}]
  %s4 = inlined_call_operand.vmem [shape: f32[1,32], index: 4, kind: input, shape index: {}]
  %s5 = inlined_call_operand.hbm [shape: f32[32,32], index: 5, kind: input, shape index: {}]
  %s6 = inlined_call_operand.vmem [shape: f32[1,32], index: 6, kind: input, shape index: {}]
  %s7 = inlined_call_operand.hbm [shape: f32[8,32], index: 7, kind: output, shape index: {}]
  %s8 = sld [smem:[#allocation0]]
  $region54: #{tpu_custom_call.1} parent=0
    _
  %s10 = ssub.s32 1, %s8
  %s11 = scalar_select 0, %s10, %s8
  $region1: #{tpu_custom_call.1} parent=0
    #allocation2 [shape = 'u8[4096]{0}', space=vmem, size = 0x1000, scoped, tag = 'input window, operand 0, single buffered']
    #allocation3 [shape = 's32[1]{0}', space=sflag, size = 0x4, scoped, tag = 'scoped memory for tpu_custom_call.1']
    #allocation4 [shape = 's32[1]{0}', space=sflag, size = 0x4, scoped, tag = 'scoped memory for tpu_custom_call.1']
    #allocation5 [shape = 'u8[16384]{0}', space=vmem, size = 0x4000, scoped, tag = 'input window, operand 1, single buffered']
    #allocation6 [shape = 's32[1]{0}', space=sflag, size = 0x4, scoped, tag = 'scoped memory for tpu_custom_call.1']
    #allocation7 [shape = 'u8[16384]{0}', space=vmem, size = 0x4000, scoped, tag = 'input window, operand 3, single buffered']
    #allocation8 [shape = 'u8[16384]{0}', space=vmem, size = 0x4000, scoped, tag = 'input window, operand 5, single buffered']
    #allocation9 [shape = 's32[1]{0}', space=sflag, size = 0x4, scoped, tag = 'scoped memory for tpu_custom_call.1']
    #allocation10 [shape = 'u8[4096]{0}', space=vmem, size = 0x1000, scoped, tag = 'output window, operand 0, single buffered']
    %12 = vsyncpa [#allocation3], 0
    %13 = vsyncpa [#allocation6], 0
    %14 = vsyncpa [#allocation9], 0
    %15 = vsyncpa [#allocation4], 0
    // Predicated region
    $region2: #{tpu_custom_call.1} parent=1 // pred_check
      _
    $region3: #{tpu_custom_call.1} parent=1 // pred_check_branch
      %17 = sbr.rel (0) target = $region5
    $region4: #{tpu_custom_call.1} parent=1 // pred_region
      %s19 = ssub.s32 128, 128
      %20 = vsyncadd [#allocation3], %s19
      %s22 = sshll.u32 [#allocation2], 4
      %s23 = int_to_ptr.vmem [resolvable:$true] %s22
      %25 = dma.hbm_to_vmem [thread:$0]  %s0, 128, %s23, [#allocation3]
    $region5: #{tpu_custom_call.1} parent=1 // pred_fallthru
      _
    // Predicated region
    $region6: #{tpu_custom_call.1} parent=1 // pred_check
      _
    $region7: #{tpu_custom_call.1} parent=1 // pred_check_branch
      %27 = sbr.rel (0) target = $region9
    $region8: #{tpu_custom_call.1} parent=1 // pred_region
      %s29 = ssub.s32 512, 512
      %30 = vsyncadd [#allocation6], %s29
      %s31 = sshll.u32 [#allocation5], 4
      %s32 = int_to_ptr.vmem [resolvable:$true] %s31
      %37 = dma.hbm_to_vmem [thread:$0]  %s1, 512, %s32, [#allocation6], 128, 128, 8
    $region9: #{tpu_custom_call.1} parent=1 // pred_fallthru
      _
    // Predicated region
    $region10: #{tpu_custom_call.1} parent=1 // pred_check
      _
    $region11: #{tpu_custom_call.1} parent=1 // pred_check_branch
      %39 = sbr.rel (0) target = $region13
    $region12: #{tpu_custom_call.1} parent=1 // pred_region
      _
    $region13: #{tpu_custom_call.1} parent=1 // pred_fallthru
      _
    // Predicated region
    $region14: #{tpu_custom_call.1} parent=1 // pred_check
      _
    $region15: #{tpu_custom_call.1} parent=1 // pred_check_branch
      %41 = sbr.rel (0) target = $region17
    $region16: #{tpu_custom_call.1} parent=1 // pred_region
      %s43 = ssub.s32 512, 512
      %44 = vsyncadd [#allocation6], %s43
      %s45 = sshll.u32 [#allocation7], 4
      %s46 = int_to_ptr.vmem [resolvable:$true] %s45
      %51 = dma.hbm_to_vmem [thread:$0]  %s3, 512, %s46, [#allocation6], 128, 128, 8
    $region17: #{tpu_custom_call.1} parent=1 // pred_fallthru
      _
    // Predicated region
    $region18: #{tpu_custom_call.1} parent=1 // pred_check
      _
    $region19: #{tpu_custom_call.1} parent=1 // pred_check_branch
      %53 = sbr.rel (0) target = $region21
    $region20: #{tpu_custom_call.1} parent=1 // pred_region
      _
    $region21: #{tpu_custom_call.1} parent=1 // pred_fallthru
      _
    // Predicated region
    $region22: #{tpu_custom_call.1} parent=1 // pred_check
      _
    $region23: #{tpu_custom_call.1} parent=1 // pred_check_branch
      %55 = sbr.rel (0) target = $region25
    $region24: #{tpu_custom_call.1} parent=1 // pred_region
      %s57 = ssub.s32 512, 512
      %58 = vsyncadd [#allocation9], %s57
      %s59 = sshll.u32 [#allocation8], 4
      %s60 = int_to_ptr.vmem [resolvable:$true] %s59
      %65 = dma.hbm_to_vmem [thread:$0]  %s5, 512, %s60, [#allocation9], 128, 128, 8
    $region25: #{tpu_custom_call.1} parent=1 // pred_fallthru
      _
    // Predicated region
    $region26: #{tpu_custom_call.1} parent=1 // pred_check
      _
    $region27: #{tpu_custom_call.1} parent=1 // pred_check_branch
      %67 = sbr.rel (0) target = $region29
    $region28: #{tpu_custom_call.1} parent=1 // pred_region
      _
    $region29: #{tpu_custom_call.1} parent=1 // pred_fallthru
      _
    // Predicated region
    $region30: #{tpu_custom_call.1} parent=1 // pred_check
      _
    $region31: #{tpu_custom_call.1} parent=1 // pred_check_branch
      %69 = sbr.rel (0) target = $region33
    $region32: #{tpu_custom_call.1} parent=1 // pred_region
      %70 = dma.done [#allocation3], 128
    $region33: #{tpu_custom_call.1} parent=1 // pred_fallthru
      _
    // Predicated region
    $region34: #{tpu_custom_call.1} parent=1 // pred_check
      _
    $region35: #{tpu_custom_call.1} parent=1 // pred_check_branch
      %72 = sbr.rel (0) target = $region37
    $region36: #{tpu_custom_call.1} parent=1 // pred_region
      %73 = dma.done [#allocation6], 512
    $region37: #{tpu_custom_call.1} parent=1 // pred_fallthru
      _
    // Predicated region
    $region38: #{tpu_custom_call.1} parent=1 // pred_check
      _
    $region39: #{tpu_custom_call.1} parent=1 // pred_check_branch
      %75 = sbr.rel (0) target = $region41
    $region40: #{tpu_custom_call.1} parent=1 // pred_region
      %76 = dma.done [#allocation6], 512
    $region41: #{tpu_custom_call.1} parent=1 // pred_fallthru
      _
    // Predicated region
    $region42: #{tpu_custom_call.1} parent=1 // pred_check
      _
    $region43: #{tpu_custom_call.1} parent=1 // pred_check_branch
      %78 = sbr.rel (0) target = $region45
    $region44: #{tpu_custom_call.1} parent=1 // pred_region
      %79 = dma.done [#allocation9], 512
    $region45: #{tpu_custom_call.1} parent=1 // pred_fallthru
      _
    %v80 = vld [vmem:[#allocation2] sm:$0xff]
    %v81 = vld [vmem:[#allocation5] sm:$0xff]
    %v82 = vld [vmem:[#allocation5 + $0x8] sm:$0xff]
    %v83 = vld [vmem:[#allocation5 + $0x10] sm:$0xff]
    %v84 = vld [vmem:[#allocation5 + $0x18] sm:$0xff]
    %v85 = vld [vmem:[%s2] sm:$0x1]
    %v87 = vlaneseq
    %v88 = vshrl.u32 %v87, 7
    %v89 = vsub.s32 0, %v88
    %v90 = vrot.slane %v85, %v89
    %vm92 = vcmask 261120
    %v94 = vsel %vm92, %v80, 0
    %96 = vmatprep.subr.mxu0 0.0
    %97 = vmatpush1.msra.mxu0 0.0
    %98 = vmatprep.subr.mxu0 0.0
    %99 = vmatpush1.msra.mxu0 0.0
    %100 = vmatprep.subr.mxu0 0.0
    %101 = vmatpush1.msra.mxu0 0.0
    %102 = vmatprep.subr.mxu0 0.0
    %103 = vmatpush1.msra.mxu0 0.0
    %104 = vmatprep.subr.mxu0 0.0
    %105 = vmatpush1.msra.mxu0 0.0
    %106 = vmatprep.subr.mxu0 0.0
    %107 = vmatpush1.msra.mxu0 0.0
    %108 = vmatprep.subr.mxu0 0.0
    %109 = vmatpush1.msra.mxu0 0.0
    %110 = vmatprep.subr.mxu0 0.0
    %111 = vmatpush1.msra.mxu0 0.0
    %112 = vmatprep.subr.mxu0 0.0
    %113 = vmatpush1.msra.mxu0 0.0
    %114 = vmatprep.subr.mxu0 0.0
    %115 = vmatpush1.msra.mxu0 0.0
    %116 = vmatprep.subr.mxu0 0.0
    %117 = vmatpush1.msra.mxu0 0.0
    %118 = vmatprep.subr.mxu0 0.0
    %119 = vmatpush1.msra.mxu0 0.0
    %120 = vmatprep.subr.mxu0 0.0
    %121 = vmatpush1.msra.mxu0 %v84
    %122 = vmatprep.subr.mxu0 0.0
    %123 = vmatpush1.msra.mxu0 %v83
    %124 = vmatprep.subr.mxu0 0.0
    %125 = vmatpush1.msra.mxu0 %v82
    %126 = vmatprep.subr.mxu0 0.0
    %127 = vmatpush1.msra.mxu0 %v81
    %128 = vmatprep.subr.mxu0 0.0
    %129 = vmatpush2.msra.mxu0 0.0
    %130 = vmatprep.subr.mxu0 0.0
    %131 = vmatpush2.msra.mxu0 0.0
    %132 = vmatprep.subr.mxu0 0.0
    %133 = vmatpush2.msra.mxu0 0.0
    %134 = vmatprep.subr.mxu0 0.0
    %135 = vmatpush2.msra.mxu0 0.0
    %136 = vmatprep.subr.mxu0 0.0
    %137 = vmatpush2.msra.mxu0 0.0
    %138 = vmatprep.subr.mxu0 0.0
    %139 = vmatpush2.msra.mxu0 0.0
    %140 = vmatprep.subr.mxu0 0.0
    %141 = vmatpush2.msra.mxu0 0.0
    %142 = vmatprep.subr.mxu0 0.0
    %143 = vmatpush2.msra.mxu0 0.0
    %144 = vmatprep.subr.mxu0 0.0
    %145 = vmatpush2.msra.mxu0 0.0
    %146 = vmatprep.subr.mxu0 0.0
    %147 = vmatpush2.msra.mxu0 0.0
    %148 = vmatprep.subr.mxu0 0.0
    %149 = vmatpush2.msra.mxu0 0.0
    %150 = vmatprep.subr.mxu0 0.0
    %151 = vmatpush2.msra.mxu0 0.0
    %152 = vmatprep.subr.mxu0 0.0
    %153 = vmatpush2.msra.mxu0 0.0
    %154 = vmatprep.subr.mxu0 0.0
    %155 = vmatpush2.msra.mxu0 0.0
    %156 = vmatprep.subr.mxu0 0.0
    %157 = vmatpush2.msra.mxu0 0.0
    %158 = vmatprep.subr.mxu0 0.0
    %159 = vmatpush2.msra.mxu0 0.0
    %160 = vmatprep.mubr.f32.mxu0 0.0
    %161 = vmatmul.mubr.f32.gmra.mxu0 %v94
    %v162 = vpop.f32.mrf.mxu0
    %v163 = vadd.f32 %v90, %v162
    %v164 = vpop.f32.mrf.mxu0
    %165 = vdwg.mxu0
    %vm166 = vcmp.gt.f32.partialorder %v163, 0.0
    %v167 = vmul.f32 %v163, 0.2
    %v168 = vsel %vm166, %v163, %v167
    %v169 = vld [vmem:[#allocation7] sm:$0xff]
    %v170 = vld [vmem:[#allocation7 + $0x8] sm:$0xff]
    %v171 = vld [vmem:[#allocation7 + $0x10] sm:$0xff]
    %v172 = vld [vmem:[#allocation7 + $0x18] sm:$0xff]
    %v173 = vld [vmem:[%s4] sm:$0x1]
    %v175 = vlaneseq
    %v176 = vshrl.u32 %v175, 7
    %v177 = vsub.s32 0, %v176
    %v178 = vrot.slane %v173, %v177
    %v181 = vsel %vm92, %v168, 0
    %183 = vmatprep.subr.mxu0 0.0
    %184 = vmatpush1.msra.mxu0 0.0
    %185 = vmatprep.subr.mxu0 0.0
    %186 = vmatpush1.msra.mxu0 0.0
    %187 = vmatprep.subr.mxu0 0.0
    %188 = vmatpush1.msra.mxu0 0.0
    %189 = vmatprep.subr.mxu0 0.0
    %190 = vmatpush1.msra.mxu0 0.0
    %191 = vmatprep.subr.mxu0 0.0
    %192 = vmatpush1.msra.mxu0 0.0
    %193 = vmatprep.subr.mxu0 0.0
    %194 = vmatpush1.msra.mxu0 0.0
    %195 = vmatprep.subr.mxu0 0.0
    %196 = vmatpush1.msra.mxu0 0.0
    %197 = vmatprep.subr.mxu0 0.0
    %198 = vmatpush1.msra.mxu0 0.0
    %199 = vmatprep.subr.mxu0 0.0
    %200 = vmatpush1.msra.mxu0 0.0
    %201 = vmatprep.subr.mxu0 0.0
    %202 = vmatpush1.msra.mxu0 0.0
    %203 = vmatprep.subr.mxu0 0.0
    %204 = vmatpush1.msra.mxu0 0.0
    %205 = vmatprep.subr.mxu0 0.0
    %206 = vmatpush1.msra.mxu0 0.0
    %207 = vmatprep.subr.mxu0 0.0
    %208 = vmatpush1.msra.mxu0 %v172
    %209 = vmatprep.subr.mxu0 0.0
    %210 = vmatpush1.msra.mxu0 %v171
    %211 = vmatprep.subr.mxu0 0.0
    %212 = vmatpush1.msra.mxu0 %v170
    %213 = vmatprep.subr.mxu0 0.0
    %214 = vmatpush1.msra.mxu0 %v169
    %215 = vmatprep.subr.mxu0 0.0
    %216 = vmatpush2.msra.mxu0 0.0
    %217 = vmatprep.subr.mxu0 0.0
    %218 = vmatpush2.msra.mxu0 0.0
    %219 = vmatprep.subr.mxu0 0.0
    %220 = vmatpush2.msra.mxu0 0.0
    %221 = vmatprep.subr.mxu0 0.0
    %222 = vmatpush2.msra.mxu0 0.0
    %223 = vmatprep.subr.mxu0 0.0
    %224 = vmatpush2.msra.mxu0 0.0
    %225 = vmatprep.subr.mxu0 0.0
    %226 = vmatpush2.msra.mxu0 0.0
    %227 = vmatprep.subr.mxu0 0.0
    %228 = vmatpush2.msra.mxu0 0.0
    %229 = vmatprep.subr.mxu0 0.0
    %230 = vmatpush2.msra.mxu0 0.0
    %231 = vmatprep.subr.mxu0 0.0
    %232 = vmatpush2.msra.mxu0 0.0
    %233 = vmatprep.subr.mxu0 0.0
    %234 = vmatpush2.msra.mxu0 0.0
    %235 = vmatprep.subr.mxu0 0.0
    %236 = vmatpush2.msra.mxu0 0.0
    %237 = vmatprep.subr.mxu0 0.0
    %238 = vmatpush2.msra.mxu0 0.0
    %239 = vmatprep.subr.mxu0 0.0
    %240 = vmatpush2.msra.mxu0 0.0
    %241 = vmatprep.subr.mxu0 0.0
    %242 = vmatpush2.msra.mxu0 0.0
    %243 = vmatprep.subr.mxu0 0.0
    %244 = vmatpush2.msra.mxu0 0.0
    %245 = vmatprep.subr.mxu0 0.0
    %246 = vmatpush2.msra.mxu0 0.0
    %247 = vmatprep.mubr.f32.mxu0 0.0
    %248 = vmatmul.mubr.f32.gmra.mxu0 %v181
    %v249 = vpop.f32.mrf.mxu0
    %v250 = vadd.f32 %v178, %v249
    %v251 = vpop.f32.mrf.mxu0
    %252 = vdwg.mxu0
    %vm253 = vcmp.gt.f32.partialorder %v250, 0.0
    %v254 = vmul.f32 %v250, 0.2
    %v255 = vsel %vm253, %v250, %v254
    %v256 = vld [vmem:[#allocation8] sm:$0xff]
    %v257 = vld [vmem:[#allocation8 + $0x8] sm:$0xff]
    %v258 = vld [vmem:[#allocation8 + $0x10] sm:$0xff]
    %v259 = vld [vmem:[#allocation8 + $0x18] sm:$0xff]
    %v260 = vld [vmem:[%s6] sm:$0x1]
    %v262 = vlaneseq
    %v263 = vshrl.u32 %v262, 7
    %v264 = vsub.s32 0, %v263
    %v265 = vrot.slane %v260, %v264
    %v268 = vsel %vm92, %v255, 0
    %270 = vmatprep.subr.mxu0 0.0
    %271 = vmatpush1.msra.mxu0 0.0
    %272 = vmatprep.subr.mxu0 0.0
    %273 = vmatpush1.msra.mxu0 0.0
    %274 = vmatprep.subr.mxu0 0.0
    %275 = vmatpush1.msra.mxu0 0.0
    %276 = vmatprep.subr.mxu0 0.0
    %277 = vmatpush1.msra.mxu0 0.0
    %278 = vmatprep.subr.mxu0 0.0
    %279 = vmatpush1.msra.mxu0 0.0
    %280 = vmatprep.subr.mxu0 0.0
    %281 = vmatpush1.msra.mxu0 0.0
    %282 = vmatprep.subr.mxu0 0.0
    %283 = vmatpush1.msra.mxu0 0.0
    %284 = vmatprep.subr.mxu0 0.0
    %285 = vmatpush1.msra.mxu0 0.0
    %286 = vmatprep.subr.mxu0 0.0
    %287 = vmatpush1.msra.mxu0 0.0
    %288 = vmatprep.subr.mxu0 0.0
    %289 = vmatpush1.msra.mxu0 0.0
    %290 = vmatprep.subr.mxu0 0.0
    %291 = vmatpush1.msra.mxu0 0.0
    %292 = vmatprep.subr.mxu0 0.0
    %293 = vmatpush1.msra.mxu0 0.0
    %294 = vmatprep.subr.mxu0 0.0
    %295 = vmatpush1.msra.mxu0 %v259
    %296 = vmatprep.subr.mxu0 0.0
    %297 = vmatpush1.msra.mxu0 %v258
    %298 = vmatprep.subr.mxu0 0.0
    %299 = vmatpush1.msra.mxu0 %v257
    %300 = vmatprep.subr.mxu0 0.0
    %301 = vmatpush1.msra.mxu0 %v256
    %302 = vmatprep.subr.mxu0 0.0
    %303 = vmatpush2.msra.mxu0 0.0
    %304 = vmatprep.subr.mxu0 0.0
    %305 = vmatpush2.msra.mxu0 0.0
    %306 = vmatprep.subr.mxu0 0.0
    %307 = vmatpush2.msra.mxu0 0.0
    %308 = vmatprep.subr.mxu0 0.0
    %309 = vmatpush2.msra.mxu0 0.0
    %310 = vmatprep.subr.mxu0 0.0
    %311 = vmatpush2.msra.mxu0 0.0
    %312 = vmatprep.subr.mxu0 0.0
    %313 = vmatpush2.msra.mxu0 0.0
    %314 = vmatprep.subr.mxu0 0.0
    %315 = vmatpush2.msra.mxu0 0.0
    %316 = vmatprep.subr.mxu0 0.0
    %317 = vmatpush2.msra.mxu0 0.0
    %318 = vmatprep.subr.mxu0 0.0
    %319 = vmatpush2.msra.mxu0 0.0
    %320 = vmatprep.subr.mxu0 0.0
    %321 = vmatpush2.msra.mxu0 0.0
    %322 = vmatprep.subr.mxu0 0.0
    %323 = vmatpush2.msra.mxu0 0.0
    %324 = vmatprep.subr.mxu0 0.0
    %325 = vmatpush2.msra.mxu0 0.0
    %326 = vmatprep.subr.mxu0 0.0
    %327 = vmatpush2.msra.mxu0 0.0
    %328 = vmatprep.subr.mxu0 0.0
    %329 = vmatpush2.msra.mxu0 0.0
    %330 = vmatprep.subr.mxu0 0.0
    %331 = vmatpush2.msra.mxu0 0.0
    %332 = vmatprep.subr.mxu0 0.0
    %333 = vmatpush2.msra.mxu0 0.0
    %334 = vmatprep.mubr.f32.mxu0 0.0
    %335 = vmatmul.mubr.f32.gmra.mxu0 %v268
    %v336 = vpop.f32.mrf.mxu0
    %v337 = vadd.f32 %v265, %v336
    %v338 = vpop.f32.mrf.mxu0
    %339 = vdwg.mxu0
    %340 = vst.msk [vmem:[#allocation10] sm:$0xff] %vm92, %v337
    // Predicated region
    $region46: #{tpu_custom_call.1} parent=1 // pred_check
      _
    $region47: #{tpu_custom_call.1} parent=1 // pred_check_branch
      %342 = sbr.rel (0) target = $region49
    $region48: #{tpu_custom_call.1} parent=1 // pred_region
      %s344 = ssub.s32 128, 128
      %345 = vsyncadd [#allocation4], %s344
      %s347 = sshll.u32 [#allocation10], 4
      %s348 = int_to_ptr.vmem [resolvable:$true] %s347
      %350 = dma.vmem_to_hbm [thread:$0]  %s348, 128, %s7, [#allocation4]
    $region49: #{tpu_custom_call.1} parent=1 // pred_fallthru
      _
    // Predicated region
    $region50: #{tpu_custom_call.1} parent=1 // pred_check
      _
    $region51: #{tpu_custom_call.1} parent=1 // pred_check_branch
      %352 = sbr.rel (0) target = $region53
    $region52: #{tpu_custom_call.1} parent=1 // pred_region
      %353 = dma.done [#allocation4], 128
    $region53: #{tpu_custom_call.1} parent=1 // pred_fallthru
      _
    %354 = vsyncpa [#allocation3], 1
    %355 = vsyncpa [#allocation6], 1
    %356 = vsyncpa [#allocation9], 1
    %357 = vsyncpa [#allocation4], 1

</llo_original>
